<compile_context>
chip_gen: v7x
topology: tpu7x:2x2x1
jax: 0.10.0
libtpu: 0.0.40
codegen_flags: <defaults>
</compile_context>

<pallas_src>
import jax
import jax.numpy as jnp
from jax.experimental import pallas as pl
from jax.experimental.pallas import tpu as pltpu

_LANE = 128
_SUBLANE = 8
_MAX_ROW_TILE = 4096
_TARGET_TILE_BYTES = 2 << 20  # ~2 MiB per streamed x/out buffer


def _round_up(a: int, m: int) -> int:
    return ((a + m - 1) // m) * m


def _sescale_kernel(x_ref, w1_ref, b1_ref, w2_ref, b2_ref, o_ref):
    x = x_ref[...]                                              # (TN, ch_p), native dtype
    # fc1 + ReLU (f32 accumulation on the MXU)
    h = jnp.dot(x, w1_ref[...], preferred_element_type=jnp.float32) + b1_ref[...]
    h = jnp.maximum(h, 0.0)                                     # (TN, r) f32
    # fc2 + sigmoid
    s = jnp.dot(h, w2_ref[...], preferred_element_type=jnp.float32) + b2_ref[...]
    s = jax.nn.sigmoid(s)                                       # (TN, ch_p) f32
    # Gate the input without duplicating the x tile in f32.
    o_ref[...] = (s.astype(x.dtype) * x).astype(o_ref.dtype)


def _vmem_capacity_bytes() -> int:
    try:
        return int(pltpu.get_tpu_info().vmem_capacity_bytes)
    except Exception:
        return 64 << 20  # conservative fallback (v7x per-TensorCore VMEM)


def _pick_row_tile(n_rows: int, ch_p: int, r: int, itemsize: int,
                   budget_bytes: int) -> int:
    """Largest byte-sized row tile (multiple of 8) within the VMEM budget."""
    # ~2 MiB per x/out tile buffer (HBM-roofline sweet spot), floor of 512 rows.
    target_rows = max(512, _TARGET_TILE_BYTES // max(ch_p * itemsize, 1))
    # Per-row pipelined footprint: x + out tiles, each double-buffered (native
    # dtype), plus f32 intermediates h (r) and s (ch_p).
    per_row = 2 * 2 * ch_p * itemsize + 4 * (ch_p + r)
    # Resident weights/biases; assume the pipeliner double-buffers them (worst case).
    weight_bytes = 2 * (ch_p * r + r + ch_p) * itemsize
    avail = max(budget_bytes - weight_bytes, per_row * _SUBLANE)
    fit = max(avail // per_row, _SUBLANE)
    tn = int(min(target_rows, _MAX_ROW_TILE, fit))
    # Keep at least 2 row tiles so a "parallel" grid can span both v7x TCs.
    if n_rows > _SUBLANE:
        tn = min(tn, _round_up(pl.cdiv(n_rows, 2), _SUBLANE))
    return max(_SUBLANE, (tn // _SUBLANE) * _SUBLANE)


def se_scale(x, w1, b1, w2, b2, *, row_tile=None):
    """out = sigmoid(relu(x @ w1 + b1) @ w2 + b2) * x, acting on the last dim.

    x: (..., ch); w1: (ch, r); b1: (r,)|(1, r); w2: (r, ch); b2: (ch,)|(1, ch).
    """
    orig_shape = x.shape
    ch = orig_shape[-1]
    r = w1.shape[1]
    x2 = x.reshape(-1, ch)
    n = x2.shape[0]

    b1 = b1.reshape(1, r)
    b2 = b2.reshape(1, ch)

    # Lane-dense channel padding ONLY when ch is not a multiple of 128 (common
    # real shapes pay nothing).  Zero padding is semantically inert: padded x
    # lanes are 0 so the gated output is 0 there; extra w1 rows are 0 so fc1 is
    # unchanged; padded fc2 output columns are sliced off below.  Rows are NOT
    # padded: the grid is ragged and OOB writes of the last tile are dropped.
    ch_p = _round_up(ch, _LANE)
    pad_ch = ch_p - ch
    if pad_ch:
        x2 = jnp.pad(x2, ((0, 0), (0, pad_ch)))
        w1 = jnp.pad(w1, ((0, pad_ch), (0, 0)))
        w2 = jnp.pad(w2, ((0, 0), (0, pad_ch)))
        b2 = jnp.pad(b2, ((0, 0), (0, pad_ch)))

    itemsize = jnp.dtype(x.dtype).itemsize
    vmem_cap = _vmem_capacity_bytes()
    budget = max(vmem_cap // 2, 16 << 20)

    if row_tile is not None:
        tn = max(_SUBLANE, _round_up(int(row_tile), _SUBLANE))
    else:
        tn = _pick_row_tile(n, ch_p, r, itemsize, budget)
    tn = min(tn, _round_up(max(n, 1), _SUBLANE))  # never larger than the problem

    grid = (pl.cdiv(n, tn),)

    # Footprint-derived VMEM limit: resident weights (x2 for possible double
    # buffering) + double-buffered x/out tiles + f32 intermediates + headroom.
    weight_bytes = 2 * (ch_p * r + r + ch_p) * itemsize
    tile_bytes = tn * ch_p * itemsize
    interm_bytes = tn * (r + ch_p) * 4
    vmem_limit = weight_bytes + 2 * 2 * tile_bytes + interm_bytes + (4 << 20)
    vmem_limit = int(min(max(vmem_limit, 32 << 20), vmem_cap))

    out = pl.pallas_call(
        _sescale_kernel,
        out_shape=jax.ShapeDtypeStruct((n, ch_p), x.dtype),
        grid_spec=pltpu.PrefetchScalarGridSpec(
            num_scalar_prefetch=0,
            grid=grid,
            in_specs=[
                pl.BlockSpec((tn, ch_p), lambda i: (i, 0)),   # x: streamed over rows
                pl.BlockSpec((ch_p, r), lambda i: (0, 0)),    # w1: resident
                pl.BlockSpec((1, r), lambda i: (0, 0)),       # b1: resident
                pl.BlockSpec((r, ch_p), lambda i: (0, 0)),    # w2: resident
                pl.BlockSpec((1, ch_p), lambda i: (0, 0)),    # b2: resident
            ],
            out_specs=pl.BlockSpec((tn, ch_p), lambda i: (i, 0)),
        ),
        compiler_params=pltpu.CompilerParams(
            dimension_semantics=("parallel",),  # independent row tiles -> v7x megacore
            vmem_limit_bytes=vmem_limit,
        ),
    )(x2, w1, b1, w2, b2)

    if pad_ch:
        out = out[:, :ch]
    return out.reshape(orig_shape)


def init_params(key, ch, r, dtype=jnp.float32):
    """Deterministic init mimicking torch.nn.Linear default (uniform +-1/sqrt(fan_in))."""
    k1, k2, k3, k4 = jax.random.split(key, 4)
    lim1 = 1.0 / jnp.sqrt(ch)
    lim2 = 1.0 / jnp.sqrt(r)
    # stored pre-transposed: (in, out)
    w1 = jax.random.uniform(k1, (ch, r), dtype, -lim1, lim1)
    b1 = jax.random.uniform(k2, (1, r), dtype, -lim1, lim1)
    w2 = jax.random.uniform(k3, (r, ch), dtype, -lim2, lim2)
    b2 = jax.random.uniform(k4, (1, ch), dtype, -lim2, lim2)
    return w1, b1, w2, b2


def se_scale_ref(x, w1, b1, w2, b2):
    h = jnp.maximum(x @ w1 + b1, 0.0)
    s = jax.nn.sigmoid(h @ w2 + b2)
    return s * x


if __name__ == "__main__":
    key = jax.random.PRNGKey(0)
    kx1, kx2, kp = jax.random.split(key, 3)

    CH, R = 32, 8
    w1, b1, w2, b2 = init_params(kp, CH, R)

    # Case 1: 4-D input, row count splits evenly into 2 tiles (megacore path).
    x1 = jax.random.normal(kx1, (2, 4, 16, CH), jnp.float32)
    out1 = jax.block_until_ready(se_scale(x1, w1, b1, w2, b2))
    ref1 = se_scale_ref(x1.reshape(-1, CH), w1, b1, w2, b2).reshape(x1.shape)
    assert out1.shape == x1.shape and out1.dtype == x1.dtype
    assert jnp.allclose(out1, ref1, atol=1e-5, rtol=1e-5), "mismatch vs reference (case 1)"

    # Case 2: ragged row count (n=21) -> last row tile is partial; OOB reads are
    # row-local and their stores are dropped, so valid rows must match exactly.
    x2 = jax.random.normal(kx2, (3, 7, CH), jnp.float32)
    out2 = jax.block_until_ready(se_scale(x2, w1, b1, w2, b2))
    ref2 = se_scale_ref(x2.reshape(-1, CH), w1, b1, w2, b2).reshape(x2.shape)
    assert out2.shape == x2.shape and out2.dtype == x2.dtype
    assert jnp.allclose(out2, ref2, atol=1e-5, rtol=1e-5), "mismatch vs reference (case 2)"

    print("KERNEL_OK")
</pallas_src>

<mosaic_0001>
module attributes {stable_mosaic.version = 11 : i64} {
  func.func @_sescale_kernel(%arg0: i32, %arg1: memref<64x128xf32, #tpu.memory_space<vmem>>, %arg2: memref<128x8xf32, #tpu.memory_space<vmem>>, %arg3: memref<1x8xf32, #tpu.memory_space<vmem>>, %arg4: memref<8x128xf32, #tpu.memory_space<vmem>>, %arg5: memref<1x128xf32, #tpu.memory_space<vmem>>, %arg6: memref<64x128xf32, #tpu.memory_space<vmem>>) attributes {dimension_semantics = [#tpu.dimension_semantics<parallel>], iteration_bounds = array<i64: 2>, scalar_prefetch = 0 : i64, scratch_operands = 0 : i64, tpu.core_type = #tpu.core_type<tc>, window_params = [{transform_indices = @transform_0, window_bounds = array<i64: 64, 128>}, {pipeline_mode = #tpu.pipeline_mode<synchronous>, transform_indices = @transform_1, window_bounds = array<i64: 128, 8>}, {pipeline_mode = #tpu.pipeline_mode<synchronous>, transform_indices = @transform_2, window_bounds = array<i64: 1, 8>}, {pipeline_mode = #tpu.pipeline_mode<synchronous>, transform_indices = @transform_3, window_bounds = array<i64: 8, 128>}, {pipeline_mode = #tpu.pipeline_mode<synchronous>, transform_indices = @transform_4, window_bounds = array<i64: 1, 128>}, {transform_indices = @transform_5, window_bounds = array<i64: 64, 128>}]} {
    %c0 = arith.constant 0 : index
    %c0_0 = arith.constant 0 : index
    %0 = vector.load %arg1[%c0, %c0_0] : memref<64x128xf32, #tpu.memory_space<vmem>>, vector<64x128xf32>
    %c0_1 = arith.constant 0 : index
    %c0_2 = arith.constant 0 : index
    %1 = vector.load %arg2[%c0_1, %c0_2] : memref<128x8xf32, #tpu.memory_space<vmem>>, vector<128x8xf32>
    %cst = arith.constant dense<0.000000e+00> : vector<64x8xf32>
    %2 = tpu.matmul %0, %1, %cst {dimension_numbers = #tpu.dot_dimension_numbers<[1], [0], [0], [1], [0, 0, 1, 1], [], []>} : vector<64x128xf32>, vector<128x8xf32>, vector<64x8xf32> -> vector<64x8xf32>
    %c0_3 = arith.constant 0 : index
    %c0_4 = arith.constant 0 : index
    %3 = vector.load %arg3[%c0_3, %c0_4] : memref<1x8xf32, #tpu.memory_space<vmem>>, vector<1x8xf32>
    %4 = vector.broadcast %3 : vector<1x8xf32> to vector<64x8xf32>
    %5 = arith.addf %2, %4 : vector<64x8xf32>
    %cst_5 = arith.constant 0.000000e+00 : f32
    %6 = vector.broadcast %cst_5 : f32 to vector<64x8xf32>
    %7 = arith.maximumf %5, %6 : vector<64x8xf32>
    %c0_6 = arith.constant 0 : index
    %c0_7 = arith.constant 0 : index
    %8 = vector.load %arg4[%c0_6, %c0_7] : memref<8x128xf32, #tpu.memory_space<vmem>>, vector<8x128xf32>
    %cst_8 = arith.constant dense<0.000000e+00> : vector<64x128xf32>
    %9 = tpu.matmul %7, %8, %cst_8 {dimension_numbers = #tpu.dot_dimension_numbers<[1], [0], [0], [1], [0, 0, 1, 1], [], []>} : vector<64x8xf32>, vector<8x128xf32>, vector<64x128xf32> -> vector<64x128xf32>
    %c0_9 = arith.constant 0 : index
    %c0_10 = arith.constant 0 : index
    %10 = vector.load %arg5[%c0_9, %c0_10] : memref<1x128xf32, #tpu.memory_space<vmem>>, vector<1x128xf32>
    %11 = vector.broadcast %10 : vector<1x128xf32> to vector<64x128xf32>
    %12 = arith.addf %9, %11 : vector<64x128xf32>
    %13 = arith.negf %12 : vector<64x128xf32>
    %14 = math.exp %13 : vector<64x128xf32>
    %cst_11 = arith.constant 1.000000e+00 : f32
    %15 = vector.broadcast %cst_11 : f32 to vector<64x128xf32>
    %16 = arith.addf %15, %14 : vector<64x128xf32>
    %17 = arith.divf %15, %16 : vector<64x128xf32>
    %18 = arith.mulf %17, %0 : vector<64x128xf32>
    %c0_12 = arith.constant 0 : index
    %c0_13 = arith.constant 0 : index
    %19 = vector.load %arg6[%c0_12, %c0_13] : memref<64x128xf32, #tpu.memory_space<vmem>>, vector<64x128xf32>
    tpu.vector_store %arg6[%c0_12, %c0_13], %18 {strides = array<i32>} : memref<64x128xf32, #tpu.memory_space<vmem>>, vector<64x128xf32>,
    return
  }
  func.func @transform_0(%arg0: i32) -> (i32, i32) {
    %c0_i32 = arith.constant 0 : i32
    %c0_i32_0 = arith.constant 0 : i32
    return %arg0, %c0_i32 : i32, i32
  }
  func.func @transform_1(%arg0: i32) -> (i32, i32) {
    %c0_i32 = arith.constant 0 : i32
    %c0_i32_0 = arith.constant 0 : i32
    %c0_i32_1 = arith.constant 0 : i32
    return %c0_i32, %c0_i32_0 : i32, i32
  }
  func.func @transform_2(%arg0: i32) -> (i32, i32) {
    %c0_i32 = arith.constant 0 : i32
    %c0_i32_0 = arith.constant 0 : i32
    %c0_i32_1 = arith.constant 0 : i32
    return %c0_i32, %c0_i32_0 : i32, i32
  }
  func.func @transform_3(%arg0: i32) -> (i32, i32) {
    %c0_i32 = arith.constant 0 : i32
    %c0_i32_0 = arith.constant 0 : i32
    %c0_i32_1 = arith.constant 0 : i32
    return %c0_i32, %c0_i32_0 : i32, i32
  }
  func.func @transform_4(%arg0: i32) -> (i32, i32) {
    %c0_i32 = arith.constant 0 : i32
    %c0_i32_0 = arith.constant 0 : i32
    %c0_i32_1 = arith.constant 0 : i32
    return %c0_i32, %c0_i32_0 : i32, i32
  }
  func.func @transform_5(%arg0: i32) -> (i32, i32) {
    %c0_i32 = arith.constant 0 : i32
    %c0_i32_0 = arith.constant 0 : i32
    return %arg0, %c0_i32 : i32, i32
  }
}

</mosaic_0001>

<llo_original>
// kernel: tpu_custom_call.1
$region0: #{tpu_custom_call.1}
  #allocation0 [shape = 'u32[]', space=smem, size = 0x4, offset = 0x4, fixed_abs, tag = 'smem constant byte address 0x4 - core index']
  #allocation1 [shape = 'u32[144,128]{1,0:T(1,128)}', space=vmem, size = 0x12000, scoped, tag = 'internal scratch']
  %s0 = inlined_call_operand.vmem [shape: f32[128,128], index: 0, kind: input, shape index: {}]
  %s1 = inlined_call_operand.vmem [shape: f32[128,8], index: 1, kind: input, shape index: {}]
  %s2 = inlined_call_operand.vmem [shape: f32[1,8], index: 2, kind: input, shape index: {}]
  %s3 = inlined_call_operand.vmem [shape: f32[8,128], index: 3, kind: input, shape index: {}]
  %s4 = inlined_call_operand.vmem [shape: f32[1,128], index: 4, kind: input, shape index: {}]
  %s5 = inlined_call_operand.hbm [shape: f32[128,128], index: 5, kind: output, shape index: {}]
  %s6 = sld [smem:[#allocation0]]
  $region53: #{tpu_custom_call.1} parent=0
    _
  %s8 = ssub.s32 1, %s6
  %s9 = scalar_select 0, %s8, %s6
  $region1: #{tpu_custom_call.1} parent=0
    #allocation2 [shape = 'u8[65536]{0}', space=vmem, size = 0x10000, scoped, tag = 'output window, operand 0']
    #allocation3 [shape = 's32[2]{0}', space=sflag, size = 0x8, scoped, tag = 'scoped memory for tpu_custom_call.1']
    %10 = vsyncpa [#allocation3], 0
    %s11 = scalar_lea.sflag [#allocation3], 1
    %12 = vsyncpa %s11, 0
    loop: start=0, step=1, limit=4
    $region2: #{tpu_custom_call.1} parent=1 // loop_pre_header
      _
    $region3: #{tpu_custom_call.1} parent=1 // loop_header
      %s14 = sphi 0, %s18
      %p15 = scmp.ge.s32.totalorder %s14, 4
      %s24 = sphi 0, %s26
      %s27 = sphi 0, %s24
      %s28 = sphi 0, %s27
      %s44 = sphi 0, %s28
      %s48 = sphi 0, %s48
      %s50 = sphi 0, %s48
      %s51 = sphi 0, %s50
      %s65 = sphi 0, %s51
      %s69 = sphi 0, %s69
      %s71 = sphi 0, %s69
      %s72 = sphi 0, %s71
      %s86 = sphi 0, %s72
      %s90 = sphi 0, %s90
      %s92 = sphi 0, %s90
      %s93 = sphi 0, %s92
      %s107 = sphi 0, %s93
      %s111 = sphi 0, %s111
      %s113 = sphi 0, %s111
      %s114 = sphi 0, %s113
      %s128 = sphi 0, %s114
      %s134 = sphi 0, %s136
      %s137 = sphi 0, %s134
      %s138 = sphi 0, %s137
      %s154 = sphi 0, %s138
    $region4: #{tpu_custom_call.1} parent=1 // loop_header_branch
      %17 = sbr.rel (%p15) target = $region8
    $region5: #{tpu_custom_call.1} parent=1 // loop_body
      %s19 = ssub.s32 %s14, 1
      %s20 = ssub.s32 %s14, 2
      %s21 = sadd.s32 %s14, 1
      %s22 = ssub.s32 %s14, %s21
      %p23 = scmp.eq.s32.totalorder %s22, 0
      %s25 = sadd.s32 %s24, 1
      %s26 = scalar_select %p23, %s24, %s25
      %p29 = pneg %p23
      %p30 = scmp.eq.s32.totalorder %s14, 1
      %p31 = por %p29, %p30
      %p32 = scmp.ne.s32.totalorder %s24, %s27
      %p33 = scmp.eq.s32.totalorder %s14, 0
      %p34 = por %p32, %p33
      %p35 = scmp.ne.s32.totalorder %s24, %s27
      %p36 = scmp.eq.s32.totalorder %s19, 1
      %p37 = por %p35, %p36
      %p38 = scmp.ne.s32.totalorder %s27, %s28
      %p39 = scmp.eq.s32.totalorder %s19, 0
      %p40 = por %p38, %p39
      %p41 = scmp.ne.s32.totalorder %s27, %s28
      %p42 = scmp.eq.s32.totalorder %s20, 1
      %p43 = por %p41, %p42
      %p45 = scmp.ne.s32.totalorder %s28, %s44
      %p46 = scmp.eq.s32.totalorder %s20, 0
      %p47 = por %p45, %p46
      %s49 = sadd.s32 %s48, 1
      %p52 = scmp.eq.s32.totalorder %s14, 1
      %p53 = scmp.ne.s32.totalorder %s48, %s50
      %p54 = scmp.eq.s32.totalorder %s14, 0
      %p55 = por %p53, %p54
      %p56 = scmp.ne.s32.totalorder %s48, %s50
      %p57 = scmp.eq.s32.totalorder %s19, 1
      %p58 = por %p56, %p57
      %p59 = scmp.ne.s32.totalorder %s50, %s51
      %p60 = scmp.eq.s32.totalorder %s19, 0
      %p61 = por %p59, %p60
      %p62 = scmp.ne.s32.totalorder %s50, %s51
      %p63 = scmp.eq.s32.totalorder %s20, 1
      %p64 = por %p62, %p63
      %p66 = scmp.ne.s32.totalorder %s51, %s65
      %p67 = scmp.eq.s32.totalorder %s20, 0
      %p68 = por %p66, %p67
      %s70 = sadd.s32 %s69, 1
      %p73 = scmp.eq.s32.totalorder %s14, 1
      %p74 = scmp.ne.s32.totalorder %s69, %s71
      %p75 = scmp.eq.s32.totalorder %s14, 0
      %p76 = por %p74, %p75
      %p77 = scmp.ne.s32.totalorder %s69, %s71
      %p78 = scmp.eq.s32.totalorder %s19, 1
      %p79 = por %p77, %p78
      %p80 = scmp.ne.s32.totalorder %s71, %s72
      %p81 = scmp.eq.s32.totalorder %s19, 0
      %p82 = por %p80, %p81
      %p83 = scmp.ne.s32.totalorder %s71, %s72
      %p84 = scmp.eq.s32.totalorder %s20, 1
      %p85 = por %p83, %p84
      %p87 = scmp.ne.s32.totalorder %s72, %s86
      %p88 = scmp.eq.s32.totalorder %s20, 0
      %p89 = por %p87, %p88
      %s91 = sadd.s32 %s90, 1
      %p94 = scmp.eq.s32.totalorder %s14, 1
      %p95 = scmp.ne.s32.totalorder %s90, %s92
      %p96 = scmp.eq.s32.totalorder %s14, 0
      %p97 = por %p95, %p96
      %p98 = scmp.ne.s32.totalorder %s90, %s92
      %p99 = scmp.eq.s32.totalorder %s19, 1
      %p100 = por %p98, %p99
      %p101 = scmp.ne.s32.totalorder %s92, %s93
      %p102 = scmp.eq.s32.totalorder %s19, 0
      %p103 = por %p101, %p102
      %p104 = scmp.ne.s32.totalorder %s92, %s93
      %p105 = scmp.eq.s32.totalorder %s20, 1
      %p106 = por %p104, %p105
      %p108 = scmp.ne.s32.totalorder %s93, %s107
      %p109 = scmp.eq.s32.totalorder %s20, 0
      %p110 = por %p108, %p109
      %s112 = sadd.s32 %s111, 1
      %p115 = scmp.eq.s32.totalorder %s14, 1
      %p116 = scmp.ne.s32.totalorder %s111, %s113
      %p117 = scmp.eq.s32.totalorder %s14, 0
      %p118 = por %p116, %p117
      %p119 = scmp.ne.s32.totalorder %s111, %s113
      %p120 = scmp.eq.s32.totalorder %s19, 1
      %p121 = por %p119, %p120
      %p122 = scmp.ne.s32.totalorder %s113, %s114
      %p123 = scmp.eq.s32.totalorder %s19, 0
      %p124 = por %p122, %p123
      %p125 = scmp.ne.s32.totalorder %s113, %s114
      %p126 = scmp.eq.s32.totalorder %s20, 1
      %p127 = por %p125, %p126
      %p129 = scmp.ne.s32.totalorder %s114, %s128
      %p130 = scmp.eq.s32.totalorder %s20, 0
      %p131 = por %p129, %p130
      %s132 = ssub.s32 %s14, %s21
      %p133 = scmp.eq.s32.totalorder %s132, 0
      %s135 = sadd.s32 %s134, 1
      %s136 = scalar_select %p133, %s134, %s135
      %p139 = pneg %p133
      %p140 = scmp.eq.s32.totalorder %s14, 1
      %p141 = por %p139, %p140
      %p142 = scmp.ne.s32.totalorder %s134, %s137
      %p143 = scmp.eq.s32.totalorder %s14, 0
      %p144 = por %p142, %p143
      %p145 = scmp.ne.s32.totalorder %s134, %s137
      %p146 = scmp.eq.s32.totalorder %s19, 1
      %p147 = por %p145, %p146
      %p148 = scmp.ne.s32.totalorder %s137, %s138
      %p149 = scmp.eq.s32.totalorder %s19, 0
      %p150 = por %p148, %p149
      %p151 = scmp.ne.s32.totalorder %s137, %s138
      %p152 = scmp.eq.s32.totalorder %s20, 1
      %p153 = por %p151, %p152
      %p155 = scmp.ne.s32.totalorder %s138, %s154
      %p156 = scmp.eq.s32.totalorder %s20, 0
      %p157 = por %p155, %p156
      %p158 = scmp.le.s32.totalorder 1, %s14
      %p159 = scmp.lt.s32.totalorder %s14, 3
      %p160 = pnand %p158, %p159
      %p161 = pneg %p160
      // Predicated region
      $region9: #{tpu_custom_call.1} parent=5 // pred_check
        _
      $region10: #{tpu_custom_call.1} parent=5 // pred_check_branch
        %163 = sbr.rel (%p160) target = $region12
      $region11: #{tpu_custom_call.1} parent=5 // pred_region
        %s164 = ssub.s32 %s14, 1
        // Predicated region
        $region13: #{tpu_custom_call.1} parent=11 // pred_check
          %p165 = pneg %p61
        $region14: #{tpu_custom_call.1} parent=11 // pred_check_branch
          %167 = sbr.rel (%p165) target = $region16
        $region15: #{tpu_custom_call.1} parent=11 // pred_region
          _
        $region16: #{tpu_custom_call.1} parent=11 // pred_fallthru
          _
        // Predicated region
        $region17: #{tpu_custom_call.1} parent=11 // pred_check
          %p168 = pneg %p82
        $region18: #{tpu_custom_call.1} parent=11 // pred_check_branch
          %170 = sbr.rel (%p168) target = $region20
        $region19: #{tpu_custom_call.1} parent=11 // pred_region
          _
        $region20: #{tpu_custom_call.1} parent=11 // pred_fallthru
          _
        // Predicated region
        $region21: #{tpu_custom_call.1} parent=11 // pred_check
          %p171 = pneg %p103
        $region22: #{tpu_custom_call.1} parent=11 // pred_check_branch
          %173 = sbr.rel (%p171) target = $region24
        $region23: #{tpu_custom_call.1} parent=11 // pred_region
          _
        $region24: #{tpu_custom_call.1} parent=11 // pred_fallthru
          _
        // Predicated region
        $region25: #{tpu_custom_call.1} parent=11 // pred_check
          %p174 = pneg %p124
        $region26: #{tpu_custom_call.1} parent=11 // pred_check_branch
          %176 = sbr.rel (%p174) target = $region28
        $region27: #{tpu_custom_call.1} parent=11 // pred_region
          _
        $region28: #{tpu_custom_call.1} parent=11 // pred_fallthru
          _
      $region12: #{tpu_custom_call.1} parent=5 // pred_fallthru
        _
      %p177 = scmp.lt.s32.totalorder %s14, 2
      // Predicated region
      $region29: #{tpu_custom_call.1} parent=5 // pred_check
        %p178 = pneg %p177
      $region30: #{tpu_custom_call.1} parent=5 // pred_check_branch
        %180 = sbr.rel (%p178) target = $region32
      $region31: #{tpu_custom_call.1} parent=5 // pred_region
        // Predicated region
        $region33: #{tpu_custom_call.1} parent=31 // pred_check
          %p181 = pneg %p34
        $region34: #{tpu_custom_call.1} parent=31 // pred_check_branch
          %183 = sbr.rel (%p181) target = $region36
        $region35: #{tpu_custom_call.1} parent=31 // pred_region
          %s184 = smul.u32 8, %s14
          %p185 = scmp.lt.s32.totalorder %s184, 15
          %s186 = scalar_select %p185, %s184, 15
          %s187 = smul.addr %s186, 8
          %s188 = scalar_lea.vmem %s0, %s187
          %s189 = smul.u32 8, %s14
        $region36: #{tpu_custom_call.1} parent=31 // pred_fallthru
          _
      $region32: #{tpu_custom_call.1} parent=5 // pred_fallthru
        _
      %p190 = scmp.le.s32.totalorder 1, %s14
      %p191 = scmp.lt.s32.totalorder %s14, 3
      %p192 = pnand %p190, %p191
      %p193 = pneg %p192
      // Predicated region
      $region37: #{tpu_custom_call.1} parent=5 // pred_check
        _
      $region38: #{tpu_custom_call.1} parent=5 // pred_check_branch
        %195 = sbr.rel (%p192) target = $region40
      $region39: #{tpu_custom_call.1} parent=5 // pred_region
        %s196 = ssub.s32 %s14, 1
        %s197 = smul.u32 8, %s19
        %p198 = scmp.lt.s32.totalorder %s197, 15
        %s199 = scalar_select %p198, %s197, 15
        %s200 = smul.addr %s199, 8
        %s201 = scalar_lea.vmem %s0, %s200
        %p202 = pneg %p40
        %p203 = pneg %p37
        %p204 = pneg %p61
        %p205 = pneg %p58
        %p206 = pneg %p82
        %p207 = pneg %p79
        %p208 = pneg %p103
        %p209 = pneg %p100
        %p210 = pneg %p124
        %p211 = pneg %p121
        %p212 = pneg %p150
        %p213 = pneg %p147
        %s214 = sand.u32 %s137, 1
        %s215 = scalar_lea.sflag [#allocation3], %s214
        %s216 = sand.u32 %s137, 1
        %s217 = smul.addr %s216, 64
        %s218 = scalar_lea.vmem [#allocation2], %s217
        %s219 = smul.u32 8, %s19
        %p220 = scmp.lt.s32.totalorder %s219, 15
        %s221 = scalar_select %p220, %s219, 15
        %s222 = smul.addr %s221, 8
        %s223 = scalar_lea.vmem %s0, %s222
        %s224 = smul.u32 8, %s19
        %s225 = smul.u32 8, %s19
        %v226 = vld [vmem:[%s223] sm:$0xff]
        %v227 = vld [vmem:[%s223 + $0x8] sm:$0xff]
        %v228 = vld [vmem:[%s223 + $0x10] sm:$0xff]
        %v229 = vld [vmem:[%s223 + $0x18] sm:$0xff]
        %v230 = vld [vmem:[%s223 + $0x20] sm:$0xff]
        %v231 = vld [vmem:[%s223 + $0x28] sm:$0xff]
        %v232 = vld [vmem:[%s223 + $0x30] sm:$0xff]
        %v233 = vld [vmem:[%s223 + $0x38] sm:$0xff]
        %v234 = vld [vmem:[%s1] sm:$0xff]
        %v235 = vld [vmem:[%s1 + $0x8] sm:$0xff]
        %v236 = vld [vmem:[%s1 + $0x10] sm:$0xff]
        %v237 = vld [vmem:[%s1 + $0x18] sm:$0xff]
        %v238 = vld [vmem:[%s1 + $0x20] sm:$0xff]
        %v239 = vld [vmem:[%s1 + $0x28] sm:$0xff]
        %v240 = vld [vmem:[%s1 + $0x30] sm:$0xff]
        %v241 = vld [vmem:[%s1 + $0x38] sm:$0xff]
        %v242 = vld [vmem:[%s1 + $0x40] sm:$0xff]
        %v243 = vld [vmem:[%s1 + $0x48] sm:$0xff]
        %v244 = vld [vmem:[%s1 + $0x50] sm:$0xff]
        %v245 = vld [vmem:[%s1 + $0x58] sm:$0xff]
        %v246 = vld [vmem:[%s1 + $0x60] sm:$0xff]
        %v247 = vld [vmem:[%s1 + $0x68] sm:$0xff]
        %v248 = vld [vmem:[%s1 + $0x70] sm:$0xff]
        %v249 = vld [vmem:[%s1 + $0x78] sm:$0xff]
        %v250 = vld [vmem:[%s2] sm:$0x1]
        %v252 = vlaneseq
        %v253 = vshrl.u32 %v252, 7
        %v254 = vsub.s32 0, %v253
        %v255 = vrot.slane %v250, %v254
        %257 = vmatprep.subr.mxu0 0.0
        %258 = vmatpush1.msra.mxu0 %v234
        %259 = vmatprep.subr.mxu0 0.0
        %260 = vmatpush1.msra.mxu0 %v235
        %261 = vmatprep.subr.mxu0 0.0
        %262 = vmatpush1.msra.mxu0 %v236
        %263 = vmatprep.subr.mxu0 0.0
        %264 = vmatpush1.msra.mxu0 %v237
        %265 = vmatprep.subr.mxu0 0.0
        %266 = vmatpush1.msra.mxu0 %v238
        %267 = vmatprep.subr.mxu0 0.0
        %268 = vmatpush1.msra.mxu0 %v239
        %269 = vmatprep.subr.mxu0 0.0
        %270 = vmatpush1.msra.mxu0 %v240
        %271 = vmatprep.subr.mxu0 0.0
        %272 = vmatpush1.msra.mxu0 %v241
        %273 = vmatprep.subr.mxu0 0.0
        %274 = vmatpush1.msra.mxu0 %v242
        %275 = vmatprep.subr.mxu0 0.0
        %276 = vmatpush1.msra.mxu0 %v243
        %277 = vmatprep.subr.mxu0 0.0
        %278 = vmatpush1.msra.mxu0 %v244
        %279 = vmatprep.subr.mxu0 0.0
        %280 = vmatpush1.msra.mxu0 %v245
        %281 = vmatprep.subr.mxu0 0.0
        %282 = vmatpush1.msra.mxu0 %v246
        %283 = vmatprep.subr.mxu0 0.0
        %284 = vmatpush1.msra.mxu0 %v247
        %285 = vmatprep.subr.mxu0 0.0
        %286 = vmatpush1.msra.mxu0 %v248
        %287 = vmatprep.subr.mxu0 0.0
        %288 = vmatpush1.msra.mxu0 %v249
        %289 = vmatprep.subr.mxu0 0.0
        %290 = vmatpush1.msra.mxu0 0.0
        %291 = vmatprep.subr.mxu0 0.0
        %292 = vmatpush1.msra.mxu0 0.0
        %293 = vmatprep.subr.mxu0 0.0
        %294 = vmatpush1.msra.mxu0 0.0
        %295 = vmatprep.subr.mxu0 0.0
        %296 = vmatpush1.msra.mxu0 0.0
        %297 = vmatprep.subr.mxu0 0.0
        %298 = vmatpush1.msra.mxu0 0.0
        %299 = vmatprep.subr.mxu0 0.0
        %300 = vmatpush1.msra.mxu0 0.0
        %301 = vmatprep.subr.mxu0 0.0
        %302 = vmatpush1.msra.mxu0 0.0
        %303 = vmatprep.subr.mxu0 0.0
        %304 = vmatpush1.msra.mxu0 0.0
        %305 = vmatprep.subr.mxu0 0.0
        %306 = vmatpush1.msra.mxu0 0.0
        %307 = vmatprep.subr.mxu0 0.0
        %308 = vmatpush1.msra.mxu0 0.0
        %309 = vmatprep.subr.mxu0 0.0
        %310 = vmatpush1.msra.mxu0 0.0
        %311 = vmatprep.subr.mxu0 0.0
        %312 = vmatpush1.msra.mxu0 0.0
        %313 = vmatprep.subr.mxu0 0.0
        %314 = vmatpush1.msra.mxu0 0.0
        %315 = vmatprep.subr.mxu0 0.0
        %316 = vmatpush1.msra.mxu0 0.0
        %317 = vmatprep.subr.mxu0 0.0
        %318 = vmatpush1.msra.mxu0 0.0
        %319 = vmatprep.subr.mxu0 0.0
        %320 = vmatpush1.msra.mxu0 0.0
        %321 = vmatprep.mubr.f32.mxu0 0.0
        %322 = vmatmul.mubr.f32.gmra.mrb[0].mxu0 %v226
        %v323 = vpop.f32.mrb[0].mxu0
        %v324 = vadd.f32 %v255, %v323
        %v325 = vpop.f32.mrb[0].mxu0
        %326 = vmatprep.mubr.f32.mxu0 0.0
        %327 = vmatmul.mubr.f32.gmra.mrb[0].mxu0 %v227
        %v328 = vpop.f32.mrb[0].mxu0
        %v329 = vadd.f32 %v255, %v328
        %v330 = vpop.f32.mrb[0].mxu0
        %331 = vmatprep.mubr.f32.mxu0 0.0
        %332 = vmatmul.mubr.f32.gmra.mrb[0].mxu0 %v228
        %v333 = vpop.f32.mrb[0].mxu0
        %v334 = vadd.f32 %v255, %v333
        %v335 = vpop.f32.mrb[0].mxu0
        %336 = vmatprep.mubr.f32.mxu0 0.0
        %337 = vmatmul.mubr.f32.gmra.mrb[0].mxu0 %v229
        %v338 = vpop.f32.mrb[0].mxu0
        %v339 = vadd.f32 %v255, %v338
        %v340 = vpop.f32.mrb[0].mxu0
        %341 = vmatprep.mubr.f32.mxu0 0.0
        %342 = vmatmul.mubr.f32.gmra.mrb[0].mxu0 %v230
        %v343 = vpop.f32.mrb[0].mxu0
        %v344 = vadd.f32 %v255, %v343
        %v345 = vpop.f32.mrb[0].mxu0
        %346 = vmatprep.mubr.f32.mxu0 0.0
        %347 = vmatmul.mubr.f32.gmra.mrb[0].mxu0 %v231
        %v348 = vpop.f32.mrb[0].mxu0
        %v349 = vadd.f32 %v255, %v348
        %v350 = vpop.f32.mrb[0].mxu0
        %351 = vmatprep.mubr.f32.mxu0 0.0
        %352 = vmatmul.mubr.f32.gmra.mrb[0].mxu0 %v232
        %v353 = vpop.f32.mrb[0].mxu0
        %v354 = vadd.f32 %v255, %v353
        %v355 = vpop.f32.mrb[0].mxu0
        %356 = vmatprep.mubr.f32.mxu0 0.0
        %357 = vmatmul.mubr.f32.gmra.mrb[0].mxu0 %v233
        %v358 = vpop.f32.mrb[0].mxu0
        %v359 = vadd.f32 %v255, %v358
        %v360 = vpop.f32.mrb[0].mxu0
        %361 = vdwg.mxu0
        %v362 = vmax.f32 %v324, 0.0
        %v363 = vmax.f32 %v329, 0.0
        %v364 = vmax.f32 %v334, 0.0
        %v365 = vmax.f32 %v339, 0.0
        %v366 = vmax.f32 %v344, 0.0
        %v367 = vmax.f32 %v349, 0.0
        %v368 = vmax.f32 %v354, 0.0
        %v369 = vmax.f32 %v359, 0.0
        %v370 = vld [vmem:[%s3] sm:$0xff]
        %v371 = vld [vmem:[%s4] sm:$0x1]
        %v373 = vlaneseq
        %v374 = vshrl.u32 %v373, 7
        %v375 = vsub.s32 0, %v374
        %v376 = vrot.slane %v371, %v375
        %vm378 = vcmask 64512
        %v380 = vsel %vm378, %v362, 0
        %v383 = vsel %vm378, %v363, 0
        %v386 = vsel %vm378, %v364, 0
        %v389 = vsel %vm378, %v365, 0
        %v392 = vsel %vm378, %v366, 0
        %v395 = vsel %vm378, %v367, 0
        %v398 = vsel %vm378, %v368, 0
        %v401 = vsel %vm378, %v369, 0
        %403 = vmatprep.subr.mxu0 0.0
        %404 = vmatpush1.msra.mxu0 %v370
        %405 = vmatprep.subr.mxu0 0.0
        %406 = vmatpush1.msra.mxu0 0.0
        %407 = vmatprep.subr.mxu0 0.0
        %408 = vmatpush1.msra.mxu0 0.0
        %409 = vmatprep.subr.mxu0 0.0
        %410 = vmatpush1.msra.mxu0 0.0
        %411 = vmatprep.subr.mxu0 0.0
        %412 = vmatpush1.msra.mxu0 0.0
        %413 = vmatprep.subr.mxu0 0.0
        %414 = vmatpush1.msra.mxu0 0.0
        %415 = vmatprep.subr.mxu0 0.0
        %416 = vmatpush1.msra.mxu0 0.0
        %417 = vmatprep.subr.mxu0 0.0
        %418 = vmatpush1.msra.mxu0 0.0
        %419 = vmatprep.subr.mxu0 0.0
        %420 = vmatpush1.msra.mxu0 0.0
        %421 = vmatprep.subr.mxu0 0.0
        %422 = vmatpush1.msra.mxu0 0.0
        %423 = vmatprep.subr.mxu0 0.0
        %424 = vmatpush1.msra.mxu0 0.0
        %425 = vmatprep.subr.mxu0 0.0
        %426 = vmatpush1.msra.mxu0 0.0
        %427 = vmatprep.subr.mxu0 0.0
        %428 = vmatpush1.msra.mxu0 0.0
        %429 = vmatprep.subr.mxu0 0.0
        %430 = vmatpush1.msra.mxu0 0.0
        %431 = vmatprep.subr.mxu0 0.0
        %432 = vmatpush1.msra.mxu0 0.0
        %433 = vmatprep.subr.mxu0 0.0
        %434 = vmatpush1.msra.mxu0 0.0
        %435 = vmatprep.subr.mxu0 0.0
        %436 = vmatpush1.msra.mxu0 0.0
        %437 = vmatprep.subr.mxu0 0.0
        %438 = vmatpush1.msra.mxu0 0.0
        %439 = vmatprep.subr.mxu0 0.0
        %440 = vmatpush1.msra.mxu0 0.0
        %441 = vmatprep.subr.mxu0 0.0
        %442 = vmatpush1.msra.mxu0 0.0
        %443 = vmatprep.subr.mxu0 0.0
        %444 = vmatpush1.msra.mxu0 0.0
        %445 = vmatprep.subr.mxu0 0.0
        %446 = vmatpush1.msra.mxu0 0.0
        %447 = vmatprep.subr.mxu0 0.0
        %448 = vmatpush1.msra.mxu0 0.0
        %449 = vmatprep.subr.mxu0 0.0
        %450 = vmatpush1.msra.mxu0 0.0
        %451 = vmatprep.subr.mxu0 0.0
        %452 = vmatpush1.msra.mxu0 0.0
        %453 = vmatprep.subr.mxu0 0.0
        %454 = vmatpush1.msra.mxu0 0.0
        %455 = vmatprep.subr.mxu0 0.0
        %456 = vmatpush1.msra.mxu0 0.0
        %457 = vmatprep.subr.mxu0 0.0
        %458 = vmatpush1.msra.mxu0 0.0
        %459 = vmatprep.subr.mxu0 0.0
        %460 = vmatpush1.msra.mxu0 0.0
        %461 = vmatprep.subr.mxu0 0.0
        %462 = vmatpush1.msra.mxu0 0.0
        %463 = vmatprep.subr.mxu0 0.0
        %464 = vmatpush1.msra.mxu0 0.0
        %465 = vmatprep.subr.mxu0 0.0
        %466 = vmatpush1.msra.mxu0 0.0
        %467 = vmatprep.mubr.f32.mxu0 0.0
        %468 = vmatmul.mubr.f32.gmra.mrb[0].mxu0 %v380
        %v469 = vpop.f32.mrb[0].mxu0
        %v470 = vadd.f32 %v376, %v469
        %v471 = vpop.f32.mrb[0].mxu0
        %472 = vmatprep.mubr.f32.mxu0 0.0
        %473 = vmatmul.mubr.f32.gmra.mrb[0].mxu0 %v383
        %v474 = vpop.f32.mrb[0].mxu0
        %v475 = vadd.f32 %v376, %v474
        %v476 = vpop.f32.mrb[0].mxu0
        %477 = vmatprep.mubr.f32.mxu0 0.0
        %478 = vmatmul.mubr.f32.gmra.mrb[0].mxu0 %v386
        %v479 = vpop.f32.mrb[0].mxu0
        %v480 = vadd.f32 %v376, %v479
        %v481 = vpop.f32.mrb[0].mxu0
        %482 = vmatprep.mubr.f32.mxu0 0.0
        %483 = vmatmul.mubr.f32.gmra.mrb[0].mxu0 %v389
        %v484 = vpop.f32.mrb[0].mxu0
        %v485 = vadd.f32 %v376, %v484
        %v486 = vpop.f32.mrb[0].mxu0
        %487 = vmatprep.mubr.f32.mxu0 0.0
        %488 = vmatmul.mubr.f32.gmra.mrb[0].mxu0 %v392
        %v489 = vpop.f32.mrb[0].mxu0
        %v490 = vadd.f32 %v376, %v489
        %v491 = vpop.f32.mrb[0].mxu0
        %492 = vmatprep.mubr.f32.mxu0 0.0
        %493 = vmatmul.mubr.f32.gmra.mrb[0].mxu0 %v395
        %v494 = vpop.f32.mrb[0].mxu0
        %v495 = vadd.f32 %v376, %v494
        %v496 = vpop.f32.mrb[0].mxu0
        %497 = vmatprep.mubr.f32.mxu0 0.0
        %498 = vmatmul.mubr.f32.gmra.mrb[0].mxu0 %v398
        %v499 = vpop.f32.mrb[0].mxu0
        %v500 = vadd.f32 %v376, %v499
        %v501 = vpop.f32.mrb[0].mxu0
        %502 = vmatprep.mubr.f32.mxu0 0.0
        %503 = vmatmul.mubr.f32.gmra.mrb[0].mxu0 %v401
        %v504 = vpop.f32.mrb[0].mxu0
        %v505 = vadd.f32 %v376, %v504
        %v506 = vpop.f32.mrb[0].mxu0
        %507 = vdwg.mxu0
        %v508 = vxor.u32 %v470, 2147483648
        %v509 = vxor.u32 %v475, 2147483648
        %v510 = vxor.u32 %v480, 2147483648
        %v511 = vxor.u32 %v485, 2147483648
        %v512 = vxor.u32 %v490, 2147483648
        %v513 = vxor.u32 %v495, 2147483648
        %v514 = vxor.u32 %v500, 2147483648
        %v515 = vxor.u32 %v505, 2147483648
        %v516 = vmul.f32 %v508, 1.442695
        %v517 = vpow.pop %v516
        %v518 = vmul.f32 %v509, 1.442695
        %v519 = vpow.pop %v518
        %v520 = vmul.f32 %v510, 1.442695
        %v521 = vpow.pop %v520
        %v522 = vmul.f32 %v511, 1.442695
        %v523 = vpow.pop %v522
        %v524 = vmul.f32 %v512, 1.442695
        %v525 = vpow.pop %v524
        %v526 = vmul.f32 %v513, 1.442695
        %v527 = vpow.pop %v526
        %v528 = vmul.f32 %v514, 1.442695
        %v529 = vpow.pop %v528
        %v530 = vmul.f32 %v515, 1.442695
        %v531 = vpow.pop %v530
        %v532 = vadd.f32 %v517, 1.0
        %v533 = vadd.f32 %v519, 1.0
        %v534 = vadd.f32 %v521, 1.0
        %v535 = vadd.f32 %v523, 1.0
        %v536 = vadd.f32 %v525, 1.0
        %v537 = vadd.f32 %v527, 1.0
        %v538 = vadd.f32 %v529, 1.0
        %v539 = vadd.f32 %v531, 1.0
        %v540 = vrcp.pop %v532
        %v541 = vmul.f32 1.0, %v540
        %v542 = vrcp.pop %v533
        %v543 = vmul.f32 1.0, %v542
        %v544 = vrcp.pop %v534
        %v545 = vmul.f32 1.0, %v544
        %v546 = vrcp.pop %v535
        %v547 = vmul.f32 1.0, %v546
        %v548 = vrcp.pop %v536
        %v549 = vmul.f32 1.0, %v548
        %v550 = vrcp.pop %v537
        %v551 = vmul.f32 1.0, %v550
        %v552 = vrcp.pop %v538
        %v553 = vmul.f32 1.0, %v552
        %v554 = vrcp.pop %v539
        %v555 = vmul.f32 1.0, %v554
        %v556 = vmul.f32 %v541, %v226
        %v557 = vmul.f32 %v543, %v227
        %v558 = vmul.f32 %v545, %v228
        %v559 = vmul.f32 %v547, %v229
        %v560 = vmul.f32 %v549, %v230
        %v561 = vmul.f32 %v551, %v231
        %v562 = vmul.f32 %v553, %v232
        %v563 = vmul.f32 %v555, %v233
        %564 = vst [vmem:[%s218] sm:$0xff] %v556
        %565 = vst [vmem:[%s218 + $0x8] sm:$0xff] %v557
        %566 = vst [vmem:[%s218 + $0x10] sm:$0xff] %v558
        %567 = vst [vmem:[%s218 + $0x18] sm:$0xff] %v559
        %568 = vst [vmem:[%s218 + $0x20] sm:$0xff] %v560
        %569 = vst [vmem:[%s218 + $0x28] sm:$0xff] %v561
        %570 = vst [vmem:[%s218 + $0x30] sm:$0xff] %v562
        %571 = vst [vmem:[%s218 + $0x38] sm:$0xff] %v563
        %s572 = sand.u32 %s137, 1
        %s573 = scalar_lea.sflag [#allocation3], %s572
        %s574 = sand.u32 %s137, 1
        %s575 = smul.addr %s574, 64
        %s576 = scalar_lea.vmem [#allocation2], %s575
        // Predicated region
        $region41: #{tpu_custom_call.1} parent=39 // pred_check
          %p577 = pneg %p147
        $region42: #{tpu_custom_call.1} parent=39 // pred_check_branch
          %579 = sbr.rel (%p577) target = $region44
        $region43: #{tpu_custom_call.1} parent=39 // pred_region
          %s580 = smul.u32 8, %s19
          %s582 = ssub.s32 1024, 1024
          %583 = vsyncadd %s573, %s582
          %s584 = smul.addr %s580, 128
          %s585 = scalar_lea.hbm %s5, %s584
          %s586 = sshll.u32 %s576, 4
          %s587 = int_to_ptr.vmem [resolvable:$true] %s586
          %592 = dma.vmem_to_hbm [thread:$0]  %s587, 1024, %s585, %s573, 128, 128, 8
        $region44: #{tpu_custom_call.1} parent=39 // pred_fallthru
          _
      $region40: #{tpu_custom_call.1} parent=5 // pred_fallthru
        _
      %p593 = scmp.le.s32.totalorder 2, %s14
      // Predicated region
      $region45: #{tpu_custom_call.1} parent=5 // pred_check
        %p594 = pneg %p593
      $region46: #{tpu_custom_call.1} parent=5 // pred_check_branch
        %596 = sbr.rel (%p594) target = $region48
      $region47: #{tpu_custom_call.1} parent=5 // pred_region
        %s597 = ssub.s32 %s14, 2
        // Predicated region
        $region49: #{tpu_custom_call.1} parent=47 // pred_check
          %p598 = pneg %p153
        $region50: #{tpu_custom_call.1} parent=47 // pred_check_branch
          %600 = sbr.rel (%p598) target = $region52
        $region51: #{tpu_custom_call.1} parent=47 // pred_region
          %s601 = sand.u32 %s138, 1
          %s602 = scalar_lea.sflag [#allocation3], %s601
          %s603 = sand.u32 %s138, 1
          %s604 = smul.addr %s603, 64
          %s605 = scalar_lea.vmem [#allocation2], %s604
          %606 = dma.done %s602, 1024
        $region52: #{tpu_custom_call.1} parent=47 // pred_fallthru
          _
      $region48: #{tpu_custom_call.1} parent=5 // pred_fallthru
        _
    $region6: #{tpu_custom_call.1} parent=1 // loop_footer
      %s18 = sadd.s32 1, %s14
    $region7: #{tpu_custom_call.1} parent=1 // loop_footer_branch
      %13 = sbr.rel target = $region3
    $region8: #{tpu_custom_call.1} parent=1 // loop_exit
      _
    %607 = vsyncpa [#allocation3], 1
    %s608 = scalar_lea.sflag [#allocation3], 1
    %609 = vsyncpa %s608, 1

</llo_original>
